<compile_context>
chip_gen: v6e
topology: v6e:2x2x1
jax: 0.10.0
libtpu: 0.0.40
codegen_flags: <defaults>
</compile_context>

<pallas_src>
import jax
import jax.numpy as jnp
from jax.experimental import pallas as pl
from jax.experimental.pallas import tpu as pltpu


def _mlp_kernel(x_ref, w1_ref, b1_ref, w2_ref, b2_ref, out_ref):
    # fc1 on the MXU, f32 operands / f32 accumulation.
    h = jnp.dot(x_ref[...], w1_ref[...], preferred_element_type=jnp.float32)
    # bias + ReLU on the VPU (b1 is [1, Hp], broadcasts over batch rows).
    h = jnp.maximum(h + b1_ref[...], 0.0)
    # fc2 on the MXU.
    o = jnp.dot(h, w2_ref[...], preferred_element_type=jnp.float32)
    out_ref[...] = (o + b2_ref[...]).astype(out_ref.dtype)


def _round_up(n, m):
    return ((n + m - 1) // m) * m


def _num_tensorcores():
    # 1 TC/chip on v5e/v6e, 2 TCs/chip on v7x. Fall back to 1 if unknown.
    try:
        kind = (getattr(jax.devices()[0], "device_kind", "") or "").lower()
        if "v7" in kind:
            return 2
    except Exception:
        pass
    return 1


def make_simple_nn_forward(w1, b1, w2, b2):
    """Build a jitted forward for fixed weights.

    w1: [I, H]; b1: [H]; w2: [H, C]; b2: [C]. Returned fn maps [B, I] -> [B, C] f32.
    """
    I, H = w1.shape
    C = w2.shape[1]

    # Lane-dense hidden / output dims (multiples of 128).
    Hp = _round_up(max(H, 128), 128)
    Cp = _round_up(max(C, 128), 128)

    # Static weight/bias padding done ONCE at init (zero padding keeps math exact).
    w1_p = jnp.pad(w1.astype(jnp.float32), ((0, 0), (0, Hp - H)))
    b1_p = jnp.pad(b1.astype(jnp.float32), (0, Hp - H)).reshape(1, Hp)
    w2_p = jnp.pad(w2.astype(jnp.float32), ((0, Hp - H), (0, Cp - C)))
    b2_p = jnp.pad(b2.astype(jnp.float32), (0, Cp - C)).reshape(1, Cp)

    num_tc = _num_tensorcores()

    @jax.jit
    def forward(x):
        B = x.shape[0]
        # Exactly one grid step per TensorCore; batch tile padded to the f32
        # sublane granularity (8). Tiles are tiny (<< VMEM) at these dims.
        steps = max(1, min(num_tc, pl.cdiv(B, 8)))
        TB = _round_up(pl.cdiv(B, steps), 8)
        Bp = TB * steps

        x_p = jnp.pad(x.astype(jnp.float32), ((0, Bp - B), (0, 0)))

        cost = pl.CostEstimate(
            flops=2 * Bp * (I * Hp + Hp * Cp),
            transcendentals=0,
            bytes_accessed=4 * (Bp * I + I * Hp + Hp + Hp * Cp + Cp + Bp * Cp),
        )

        out_p = pl.pallas_call(
            _mlp_kernel,
            out_shape=jax.ShapeDtypeStruct((Bp, Cp), jnp.float32),
            grid_spec=pltpu.PrefetchScalarGridSpec(
                num_scalar_prefetch=0,
                grid=(steps,),
                in_specs=[
                    # batch-tiled activations
                    pl.BlockSpec((TB, I), lambda b: (b, 0)),
                    # weights / biases: constant block index -> resident in VMEM
                    pl.BlockSpec((I, Hp), lambda b: (0, 0)),
                    pl.BlockSpec((1, Hp), lambda b: (0, 0)),
                    pl.BlockSpec((Hp, Cp), lambda b: (0, 0)),
                    pl.BlockSpec((1, Cp), lambda b: (0, 0)),
                ],
                out_specs=pl.BlockSpec((TB, Cp), lambda b: (b, 0)),
            ),
            compiler_params=pltpu.CompilerParams(
                dimension_semantics=("parallel",),  # shard batch tiles across TCs (v7x)
            ),
            cost_estimate=cost,
        )(x_p, w1_p, b1_p, w2_p, b2_p)

        # Slice padding off INSIDE the jit so XLA fuses it with the kernel output.
        return out_p[:B, :C]

    return forward


def reference_forward_f32(x, w1, b1, w2, b2):
    h = jnp.maximum(x @ w1 + b1, 0.0)
    return h @ w2 + b2


if __name__ == "__main__":
    # Small shapes implied by the module: Linear(32 -> 64) -> ReLU -> Linear(64 -> 10).
    batch, input_size, hidden_size, num_classes = 64, 32, 64, 10

    key = jax.random.PRNGKey(0)
    kx, k1, k2, k3, k4 = jax.random.split(key, 5)

    x = jax.random.normal(kx, (batch, input_size), dtype=jnp.float32)

    # Deterministic init mimicking nn.Linear's uniform(-1/sqrt(fan_in), 1/sqrt(fan_in)).
    bound1 = 1.0 / jnp.sqrt(jnp.float32(input_size))
    bound2 = 1.0 / jnp.sqrt(jnp.float32(hidden_size))
    w1 = jax.random.uniform(k1, (input_size, hidden_size), jnp.float32, -bound1, bound1)
    b1 = jax.random.uniform(k2, (hidden_size,), jnp.float32, -bound1, bound1)
    w2 = jax.random.uniform(k3, (hidden_size, num_classes), jnp.float32, -bound2, bound2)
    b2 = jax.random.uniform(k4, (num_classes,), jnp.float32, -bound2, bound2)

    forward = make_simple_nn_forward(w1, b1, w2, b2)

    out = jax.block_until_ready(forward(x))
    assert out.shape == (batch, num_classes)

    ref = reference_forward_f32(x, w1, b1, w2, b2)
    assert jnp.allclose(out, ref, atol=1e-2, rtol=1e-2), \
        float(jnp.max(jnp.abs(out - ref)))

    print("KERNEL_OK")
</pallas_src>

<mosaic_0001>
module attributes {stable_mosaic.version = 11 : i64} {
  func.func @_mlp_kernel(%arg0: i32, %arg1: memref<64x32xf32, #tpu.memory_space<vmem>>, %arg2: memref<32x128xf32, #tpu.memory_space<vmem>>, %arg3: memref<1x128xf32, #tpu.memory_space<vmem>>, %arg4: memref<128x128xf32, #tpu.memory_space<vmem>>, %arg5: memref<1x128xf32, #tpu.memory_space<vmem>>, %arg6: memref<64x128xf32, #tpu.memory_space<vmem>>) attributes {dimension_semantics = [#tpu.dimension_semantics<parallel>], iteration_bounds = array<i64: 1>, scalar_prefetch = 0 : i64, scratch_operands = 0 : i64, tpu.core_type = #tpu.core_type<tc>, window_params = [{transform_indices = @transform_0, window_bounds = array<i64: 64, 32>}, {pipeline_mode = #tpu.pipeline_mode<synchronous>, transform_indices = @transform_1, window_bounds = array<i64: 32, 128>}, {pipeline_mode = #tpu.pipeline_mode<synchronous>, transform_indices = @transform_2, window_bounds = array<i64: 1, 128>}, {pipeline_mode = #tpu.pipeline_mode<synchronous>, transform_indices = @transform_3, window_bounds = array<i64: 128, 128>}, {pipeline_mode = #tpu.pipeline_mode<synchronous>, transform_indices = @transform_4, window_bounds = array<i64: 1, 128>}, {transform_indices = @transform_5, window_bounds = array<i64: 64, 128>}]} {
    %c0 = arith.constant 0 : index
    %c0_0 = arith.constant 0 : index
    %0 = vector.load %arg1[%c0, %c0_0] : memref<64x32xf32, #tpu.memory_space<vmem>>, vector<64x32xf32>
    %c0_1 = arith.constant 0 : index
    %c0_2 = arith.constant 0 : index
    %1 = vector.load %arg2[%c0_1, %c0_2] : memref<32x128xf32, #tpu.memory_space<vmem>>, vector<32x128xf32>
    %cst = arith.constant dense<0.000000e+00> : vector<64x128xf32>
    %2 = tpu.matmul %0, %1, %cst {dimension_numbers = #tpu.dot_dimension_numbers<[1], [0], [0], [1], [0, 0, 1, 1], [], []>} : vector<64x32xf32>, vector<32x128xf32>, vector<64x128xf32> -> vector<64x128xf32>
    %c0_3 = arith.constant 0 : index
    %c0_4 = arith.constant 0 : index
    %3 = vector.load %arg3[%c0_3, %c0_4] : memref<1x128xf32, #tpu.memory_space<vmem>>, vector<1x128xf32>
    %4 = vector.broadcast %3 : vector<1x128xf32> to vector<64x128xf32>
    %5 = arith.addf %2, %4 : vector<64x128xf32>
    %cst_5 = arith.constant 0.000000e+00 : f32
    %6 = vector.broadcast %cst_5 : f32 to vector<64x128xf32>
    %7 = arith.maximumf %5, %6 : vector<64x128xf32>
    %c0_6 = arith.constant 0 : index
    %c0_7 = arith.constant 0 : index
    %8 = vector.load %arg4[%c0_6, %c0_7] : memref<128x128xf32, #tpu.memory_space<vmem>>, vector<128x128xf32>
    %cst_8 = arith.constant dense<0.000000e+00> : vector<64x128xf32>
    %9 = tpu.matmul %7, %8, %cst_8 {dimension_numbers = #tpu.dot_dimension_numbers<[1], [0], [0], [1], [0, 0, 1, 1], [], []>} : vector<64x128xf32>, vector<128x128xf32>, vector<64x128xf32> -> vector<64x128xf32>
    %c0_9 = arith.constant 0 : index
    %c0_10 = arith.constant 0 : index
    %10 = vector.load %arg5[%c0_9, %c0_10] : memref<1x128xf32, #tpu.memory_space<vmem>>, vector<1x128xf32>
    %11 = vector.broadcast %10 : vector<1x128xf32> to vector<64x128xf32>
    %12 = arith.addf %9, %11 : vector<64x128xf32>
    %c0_11 = arith.constant 0 : index
    %c0_12 = arith.constant 0 : index
    %13 = vector.load %arg6[%c0_11, %c0_12] : memref<64x128xf32, #tpu.memory_space<vmem>>, vector<64x128xf32>
    tpu.vector_store %arg6[%c0_11, %c0_12], %12 {strides = array<i32>} : memref<64x128xf32, #tpu.memory_space<vmem>>, vector<64x128xf32>,
    return
  }
  func.func @transform_0(%arg0: i32) -> (i32, i32) {
    %c0_i32 = arith.constant 0 : i32
    %c0_i32_0 = arith.constant 0 : i32
    return %arg0, %c0_i32 : i32, i32
  }
  func.func @transform_1(%arg0: i32) -> (i32, i32) {
    %c0_i32 = arith.constant 0 : i32
    %c0_i32_0 = arith.constant 0 : i32
    %c0_i32_1 = arith.constant 0 : i32
    return %c0_i32, %c0_i32_0 : i32, i32
  }
  func.func @transform_2(%arg0: i32) -> (i32, i32) {
    %c0_i32 = arith.constant 0 : i32
    %c0_i32_0 = arith.constant 0 : i32
    %c0_i32_1 = arith.constant 0 : i32
    return %c0_i32, %c0_i32_0 : i32, i32
  }
  func.func @transform_3(%arg0: i32) -> (i32, i32) {
    %c0_i32 = arith.constant 0 : i32
    %c0_i32_0 = arith.constant 0 : i32
    %c0_i32_1 = arith.constant 0 : i32
    return %c0_i32, %c0_i32_0 : i32, i32
  }
  func.func @transform_4(%arg0: i32) -> (i32, i32) {
    %c0_i32 = arith.constant 0 : i32
    %c0_i32_0 = arith.constant 0 : i32
    %c0_i32_1 = arith.constant 0 : i32
    return %c0_i32, %c0_i32_0 : i32, i32
  }
  func.func @transform_5(%arg0: i32) -> (i32, i32) {
    %c0_i32 = arith.constant 0 : i32
    %c0_i32_0 = arith.constant 0 : i32
    return %arg0, %c0_i32 : i32, i32
  }
}

</mosaic_0001>

<llo_original>
// kernel: forward.1
$region0: #{forward.1}
  #allocation0 [shape = 'u32[]', space=smem, size = 0x4, offset = 0x4, fixed_abs, tag = 'smem constant byte address 0x4 - core index']
  #allocation1 [shape = 'u32[144,128]{1,0:T(1,128)}', space=vmem, size = 0x12000, scoped, tag = 'internal scratch']
  %s0 = inlined_call_operand.vmem [shape: f32[64,32], index: 0, kind: input, shape index: {}]
  %s1 = inlined_call_operand.vmem [shape: f32[32,128], index: 1, kind: input, shape index: {}]
  %s2 = inlined_call_operand.vmem [shape: f32[1,128], index: 2, kind: input, shape index: {}]
  %s3 = inlined_call_operand.hbm [shape: f32[128,128], index: 3, kind: input, shape index: {}]
  %s4 = inlined_call_operand.vmem [shape: f32[1,128], index: 4, kind: input, shape index: {}]
  %s5 = inlined_call_operand.vmem [shape: f32[64,128], index: 5, kind: output, shape index: {}]
  %s6 = sld [smem:[#allocation0]]
  $region34: #{forward.1} parent=0
    _
  %s8 = ssub.s32 1, %s6
  %s9 = scalar_select 0, %s8, %s6
  $region1: #{forward.1} parent=0
    #allocation2 [shape = 'u8[65536]{0}', space=vmem, size = 0x10000, scoped, tag = 'input window, operand 3, single buffered']
    #allocation3 [shape = 's32[1]{0}', space=sflag, size = 0x4, scoped, tag = 'scoped memory for forward.1']
    %10 = vsyncpa [#allocation3], 0
    // Predicated region
    $region2: #{forward.1} parent=1 // pred_check
      _
    $region3: #{forward.1} parent=1 // pred_check_branch
      %12 = sbr.rel (0) target = $region5
    $region4: #{forward.1} parent=1 // pred_region
      _
    $region5: #{forward.1} parent=1 // pred_fallthru
      _
    // Predicated region
    $region6: #{forward.1} parent=1 // pred_check
      _
    $region7: #{forward.1} parent=1 // pred_check_branch
      %14 = sbr.rel (0) target = $region9
    $region8: #{forward.1} parent=1 // pred_region
      _
    $region9: #{forward.1} parent=1 // pred_fallthru
      _
    // Predicated region
    $region10: #{forward.1} parent=1 // pred_check
      _
    $region11: #{forward.1} parent=1 // pred_check_branch
      %16 = sbr.rel (0) target = $region13
    $region12: #{forward.1} parent=1 // pred_region
      _
    $region13: #{forward.1} parent=1 // pred_fallthru
      _
    // Predicated region
    $region14: #{forward.1} parent=1 // pred_check
      _
    $region15: #{forward.1} parent=1 // pred_check_branch
      %18 = sbr.rel (0) target = $region17
    $region16: #{forward.1} parent=1 // pred_region
      %s20 = ssub.s32 2048, 2048
      %21 = vsyncadd [#allocation3], %s20
      %s22 = sshll.u32 [#allocation2], 4
      %s23 = int_to_ptr.vmem [resolvable:$true] %s22
      %28 = dma.hbm_to_vmem [thread:$0]  %s3, 2048, %s23, [#allocation3], 128, 128, 8
    $region17: #{forward.1} parent=1 // pred_fallthru
      _
    // Predicated region
    $region18: #{forward.1} parent=1 // pred_check
      _
    $region19: #{forward.1} parent=1 // pred_check_branch
      %30 = sbr.rel (0) target = $region21
    $region20: #{forward.1} parent=1 // pred_region
      _
    $region21: #{forward.1} parent=1 // pred_fallthru
      _
    // Predicated region
    $region22: #{forward.1} parent=1 // pred_check
      _
    $region23: #{forward.1} parent=1 // pred_check_branch
      %32 = sbr.rel (0) target = $region25
    $region24: #{forward.1} parent=1 // pred_region
      %33 = dma.done [#allocation3], 2048
    $region25: #{forward.1} parent=1 // pred_fallthru
      _
    %v34 = vld [vmem:[%s0] sm:$0xff]
    %v35 = vld [vmem:[%s0 + $0x8] sm:$0xff]
    %v36 = vld [vmem:[%s0 + $0x10] sm:$0xff]
    %v37 = vld [vmem:[%s0 + $0x18] sm:$0xff]
    %v38 = vld [vmem:[%s0 + $0x20] sm:$0xff]
    %v39 = vld [vmem:[%s0 + $0x28] sm:$0xff]
    %v40 = vld [vmem:[%s0 + $0x30] sm:$0xff]
    %v41 = vld [vmem:[%s0 + $0x38] sm:$0xff]
    %v42 = vld [vmem:[%s1] sm:$0xff]
    %v43 = vld [vmem:[%s1 + $0x8] sm:$0xff]
    %v44 = vld [vmem:[%s1 + $0x10] sm:$0xff]
    %v45 = vld [vmem:[%s1 + $0x18] sm:$0xff]
    %v46 = vld [vmem:[%s2] sm:$0x1]
    %v48 = vlaneseq
    %v49 = vshrl.u32 %v48, 7
    %v50 = vsub.s32 0, %v49
    %v51 = vrot.slane %v46, %v50
    %vm53 = vcmask 261120
    %v55 = vsel %vm53, %v34, 0
    %v58 = vsel %vm53, %v35, 0
    %v61 = vsel %vm53, %v36, 0
    %v64 = vsel %vm53, %v37, 0
    %v67 = vsel %vm53, %v38, 0
    %v70 = vsel %vm53, %v39, 0
    %v73 = vsel %vm53, %v40, 0
    %v76 = vsel %vm53, %v41, 0
    %78 = vmatprep.subr.mxu0 0.0
    %79 = vmatpush1.msra.mxu0 0.0
    %80 = vmatprep.subr.mxu0 0.0
    %81 = vmatpush1.msra.mxu0 0.0
    %82 = vmatprep.subr.mxu0 0.0
    %83 = vmatpush1.msra.mxu0 0.0
    %84 = vmatprep.subr.mxu0 0.0
    %85 = vmatpush1.msra.mxu0 0.0
    %86 = vmatprep.subr.mxu0 0.0
    %87 = vmatpush1.msra.mxu0 0.0
    %88 = vmatprep.subr.mxu0 0.0
    %89 = vmatpush1.msra.mxu0 0.0
    %90 = vmatprep.subr.mxu0 0.0
    %91 = vmatpush1.msra.mxu0 0.0
    %92 = vmatprep.subr.mxu0 0.0
    %93 = vmatpush1.msra.mxu0 0.0
    %94 = vmatprep.subr.mxu0 0.0
    %95 = vmatpush1.msra.mxu0 0.0
    %96 = vmatprep.subr.mxu0 0.0
    %97 = vmatpush1.msra.mxu0 0.0
    %98 = vmatprep.subr.mxu0 0.0
    %99 = vmatpush1.msra.mxu0 0.0
    %100 = vmatprep.subr.mxu0 0.0
    %101 = vmatpush1.msra.mxu0 0.0
    %102 = vmatprep.subr.mxu0 0.0
    %103 = vmatpush1.msra.mxu0 %v45
    %104 = vmatprep.subr.mxu0 0.0
    %105 = vmatpush1.msra.mxu0 %v44
    %106 = vmatprep.subr.mxu0 0.0
    %107 = vmatpush1.msra.mxu0 %v43
    %108 = vmatprep.subr.mxu0 0.0
    %109 = vmatpush1.msra.mxu0 %v42
    %110 = vmatprep.subr.mxu0 0.0
    %111 = vmatpush2.msra.mxu0 0.0
    %112 = vmatprep.subr.mxu0 0.0
    %113 = vmatpush2.msra.mxu0 0.0
    %114 = vmatprep.subr.mxu0 0.0
    %115 = vmatpush2.msra.mxu0 0.0
    %116 = vmatprep.subr.mxu0 0.0
    %117 = vmatpush2.msra.mxu0 0.0
    %118 = vmatprep.subr.mxu0 0.0
    %119 = vmatpush2.msra.mxu0 0.0
    %120 = vmatprep.subr.mxu0 0.0
    %121 = vmatpush2.msra.mxu0 0.0
    %122 = vmatprep.subr.mxu0 0.0
    %123 = vmatpush2.msra.mxu0 0.0
    %124 = vmatprep.subr.mxu0 0.0
    %125 = vmatpush2.msra.mxu0 0.0
    %126 = vmatprep.subr.mxu0 0.0
    %127 = vmatpush2.msra.mxu0 0.0
    %128 = vmatprep.subr.mxu0 0.0
    %129 = vmatpush2.msra.mxu0 0.0
    %130 = vmatprep.subr.mxu0 0.0
    %131 = vmatpush2.msra.mxu0 0.0
    %132 = vmatprep.subr.mxu0 0.0
    %133 = vmatpush2.msra.mxu0 0.0
    %134 = vmatprep.subr.mxu0 0.0
    %135 = vmatpush2.msra.mxu0 0.0
    %136 = vmatprep.subr.mxu0 0.0
    %137 = vmatpush2.msra.mxu0 0.0
    %138 = vmatprep.subr.mxu0 0.0
    %139 = vmatpush2.msra.mxu0 0.0
    %140 = vmatprep.subr.mxu0 0.0
    %141 = vmatpush2.msra.mxu0 0.0
    %142 = vmatprep.mubr.f32.mxu0 0.0
    %143 = vmatmul.mubr.f32.gmra.mxu0 %v55
    %v144 = vpop.f32.mrf.mxu0
    %v145 = vadd.f32 %v51, %v144
    %v146 = vpop.f32.mrf.mxu0
    %147 = vmatprep.mubr.f32.mxu0 0.0
    %148 = vmatmul.mubr.f32.gmra.mxu0 %v58
    %v149 = vpop.f32.mrf.mxu0
    %v150 = vadd.f32 %v51, %v149
    %v151 = vpop.f32.mrf.mxu0
    %152 = vmatprep.mubr.f32.mxu0 0.0
    %153 = vmatmul.mubr.f32.gmra.mxu0 %v61
    %v154 = vpop.f32.mrf.mxu0
    %v155 = vadd.f32 %v51, %v154
    %v156 = vpop.f32.mrf.mxu0
    %157 = vmatprep.mubr.f32.mxu0 0.0
    %158 = vmatmul.mubr.f32.gmra.mxu0 %v64
    %v159 = vpop.f32.mrf.mxu0
    %v160 = vadd.f32 %v51, %v159
    %v161 = vpop.f32.mrf.mxu0
    %162 = vmatprep.mubr.f32.mxu0 0.0
    %163 = vmatmul.mubr.f32.gmra.mxu0 %v67
    %v164 = vpop.f32.mrf.mxu0
    %v165 = vadd.f32 %v51, %v164
    %v166 = vpop.f32.mrf.mxu0
    %167 = vmatprep.mubr.f32.mxu0 0.0
    %168 = vmatmul.mubr.f32.gmra.mxu0 %v70
    %v169 = vpop.f32.mrf.mxu0
    %v170 = vadd.f32 %v51, %v169
    %v171 = vpop.f32.mrf.mxu0
    %172 = vmatprep.mubr.f32.mxu0 0.0
    %173 = vmatmul.mubr.f32.gmra.mxu0 %v73
    %v174 = vpop.f32.mrf.mxu0
    %v175 = vadd.f32 %v51, %v174
    %v176 = vpop.f32.mrf.mxu0
    %177 = vmatprep.mubr.f32.mxu0 0.0
    %178 = vmatmul.mubr.f32.gmra.mxu0 %v76
    %v179 = vpop.f32.mrf.mxu0
    %v180 = vadd.f32 %v51, %v179
    %v181 = vpop.f32.mrf.mxu0
    %182 = vdwg.mxu0
    %v183 = vmax.f32 %v145, 0.0
    %v184 = vmax.f32 %v150, 0.0
    %v185 = vmax.f32 %v155, 0.0
    %v186 = vmax.f32 %v160, 0.0
    %v187 = vmax.f32 %v165, 0.0
    %v188 = vmax.f32 %v170, 0.0
    %v189 = vmax.f32 %v175, 0.0
    %v190 = vmax.f32 %v180, 0.0
    %v191 = vld [vmem:[#allocation2] sm:$0xff]
    %v192 = vld [vmem:[#allocation2 + $0x8] sm:$0xff]
    %v193 = vld [vmem:[#allocation2 + $0x10] sm:$0xff]
    %v194 = vld [vmem:[#allocation2 + $0x18] sm:$0xff]
    %v195 = vld [vmem:[#allocation2 + $0x20] sm:$0xff]
    %v196 = vld [vmem:[#allocation2 + $0x28] sm:$0xff]
    %v197 = vld [vmem:[#allocation2 + $0x30] sm:$0xff]
    %v198 = vld [vmem:[#allocation2 + $0x38] sm:$0xff]
    %v199 = vld [vmem:[#allocation2 + $0x40] sm:$0xff]
    %v200 = vld [vmem:[#allocation2 + $0x48] sm:$0xff]
    %v201 = vld [vmem:[#allocation2 + $0x50] sm:$0xff]
    %v202 = vld [vmem:[#allocation2 + $0x58] sm:$0xff]
    %v203 = vld [vmem:[#allocation2 + $0x60] sm:$0xff]
    %v204 = vld [vmem:[#allocation2 + $0x68] sm:$0xff]
    %v205 = vld [vmem:[#allocation2 + $0x70] sm:$0xff]
    %v206 = vld [vmem:[#allocation2 + $0x78] sm:$0xff]
    %v207 = vld [vmem:[%s4] sm:$0x1]
    %v209 = vlaneseq
    %v210 = vshrl.u32 %v209, 7
    %v211 = vsub.s32 0, %v210
    %v212 = vrot.slane %v207, %v211
    %214 = vmatprep.subr.mxu0 0.0
    %215 = vmatpush1.msra.mxu0 %v206
    %216 = vmatprep.subr.mxu0 0.0
    %217 = vmatpush1.msra.mxu0 %v205
    %218 = vmatprep.subr.mxu0 0.0
    %219 = vmatpush1.msra.mxu0 %v204
    %220 = vmatprep.subr.mxu0 0.0
    %221 = vmatpush1.msra.mxu0 %v203
    %222 = vmatprep.subr.mxu0 0.0
    %223 = vmatpush1.msra.mxu0 %v202
    %224 = vmatprep.subr.mxu0 0.0
    %225 = vmatpush1.msra.mxu0 %v201
    %226 = vmatprep.subr.mxu0 0.0
    %227 = vmatpush1.msra.mxu0 %v200
    %228 = vmatprep.subr.mxu0 0.0
    %229 = vmatpush1.msra.mxu0 %v199
    %230 = vmatprep.subr.mxu0 0.0
    %231 = vmatpush1.msra.mxu0 %v198
    %232 = vmatprep.subr.mxu0 0.0
    %233 = vmatpush1.msra.mxu0 %v197
    %234 = vmatprep.subr.mxu0 0.0
    %235 = vmatpush1.msra.mxu0 %v196
    %236 = vmatprep.subr.mxu0 0.0
    %237 = vmatpush1.msra.mxu0 %v195
    %238 = vmatprep.subr.mxu0 0.0
    %239 = vmatpush1.msra.mxu0 %v194
    %240 = vmatprep.subr.mxu0 0.0
    %241 = vmatpush1.msra.mxu0 %v193
    %242 = vmatprep.subr.mxu0 0.0
    %243 = vmatpush1.msra.mxu0 %v192
    %244 = vmatprep.subr.mxu0 0.0
    %245 = vmatpush1.msra.mxu0 %v191
    %246 = vmatprep.subr.mxu0 0.0
    %247 = vmatpush2.msra.mxu0 0.0
    %248 = vmatprep.subr.mxu0 0.0
    %249 = vmatpush2.msra.mxu0 0.0
    %250 = vmatprep.subr.mxu0 0.0
    %251 = vmatpush2.msra.mxu0 0.0
    %252 = vmatprep.subr.mxu0 0.0
    %253 = vmatpush2.msra.mxu0 0.0
    %254 = vmatprep.subr.mxu0 0.0
    %255 = vmatpush2.msra.mxu0 0.0
    %256 = vmatprep.subr.mxu0 0.0
    %257 = vmatpush2.msra.mxu0 0.0
    %258 = vmatprep.subr.mxu0 0.0
    %259 = vmatpush2.msra.mxu0 0.0
    %260 = vmatprep.subr.mxu0 0.0
    %261 = vmatpush2.msra.mxu0 0.0
    %262 = vmatprep.subr.mxu0 0.0
    %263 = vmatpush2.msra.mxu0 0.0
    %264 = vmatprep.subr.mxu0 0.0
    %265 = vmatpush2.msra.mxu0 0.0
    %266 = vmatprep.subr.mxu0 0.0
    %267 = vmatpush2.msra.mxu0 0.0
    %268 = vmatprep.subr.mxu0 0.0
    %269 = vmatpush2.msra.mxu0 0.0
    %270 = vmatprep.subr.mxu0 0.0
    %271 = vmatpush2.msra.mxu0 0.0
    %272 = vmatprep.subr.mxu0 0.0
    %273 = vmatpush2.msra.mxu0 0.0
    %274 = vmatprep.subr.mxu0 0.0
    %275 = vmatpush2.msra.mxu0 0.0
    %276 = vmatprep.subr.mxu0 0.0
    %277 = vmatpush2.msra.mxu0 0.0
    %278 = vmatprep.mubr.f32.mxu0 0.0
    %279 = vmatmul.mubr.f32.gmra.mxu0 %v183
    %v280 = vpop.f32.mrf.mxu0
    %v281 = vadd.f32 %v212, %v280
    %v282 = vpop.f32.mrf.mxu0
    %283 = vmatprep.mubr.f32.mxu0 0.0
    %284 = vmatmul.mubr.f32.gmra.mxu0 %v184
    %v285 = vpop.f32.mrf.mxu0
    %v286 = vadd.f32 %v212, %v285
    %v287 = vpop.f32.mrf.mxu0
    %288 = vmatprep.mubr.f32.mxu0 0.0
    %289 = vmatmul.mubr.f32.gmra.mxu0 %v185
    %v290 = vpop.f32.mrf.mxu0
    %v291 = vadd.f32 %v212, %v290
    %v292 = vpop.f32.mrf.mxu0
    %293 = vmatprep.mubr.f32.mxu0 0.0
    %294 = vmatmul.mubr.f32.gmra.mxu0 %v186
    %v295 = vpop.f32.mrf.mxu0
    %v296 = vadd.f32 %v212, %v295
    %v297 = vpop.f32.mrf.mxu0
    %298 = vmatprep.mubr.f32.mxu0 0.0
    %299 = vmatmul.mubr.f32.gmra.mxu0 %v187
    %v300 = vpop.f32.mrf.mxu0
    %v301 = vadd.f32 %v212, %v300
    %v302 = vpop.f32.mrf.mxu0
    %303 = vmatprep.mubr.f32.mxu0 0.0
    %304 = vmatmul.mubr.f32.gmra.mxu0 %v188
    %v305 = vpop.f32.mrf.mxu0
    %v306 = vadd.f32 %v212, %v305
    %v307 = vpop.f32.mrf.mxu0
    %308 = vmatprep.mubr.f32.mxu0 0.0
    %309 = vmatmul.mubr.f32.gmra.mxu0 %v189
    %v310 = vpop.f32.mrf.mxu0
    %v311 = vadd.f32 %v212, %v310
    %v312 = vpop.f32.mrf.mxu0
    %313 = vmatprep.mubr.f32.mxu0 0.0
    %314 = vmatmul.mubr.f32.gmra.mxu0 %v190
    %v315 = vpop.f32.mrf.mxu0
    %v316 = vadd.f32 %v212, %v315
    %v317 = vpop.f32.mrf.mxu0
    %318 = vdwg.mxu0
    %319 = vst [vmem:[%s5] sm:$0xff] %v281
    %320 = vst [vmem:[%s5 + $0x8] sm:$0xff] %v286
    %321 = vst [vmem:[%s5 + $0x10] sm:$0xff] %v291
    %322 = vst [vmem:[%s5 + $0x18] sm:$0xff] %v296
    %323 = vst [vmem:[%s5 + $0x20] sm:$0xff] %v301
    %324 = vst [vmem:[%s5 + $0x28] sm:$0xff] %v306
    %325 = vst [vmem:[%s5 + $0x30] sm:$0xff] %v311
    %326 = vst [vmem:[%s5 + $0x38] sm:$0xff] %v316
    // Predicated region
    $region26: #{forward.1} parent=1 // pred_check
      _
    $region27: #{forward.1} parent=1 // pred_check_branch
      %328 = sbr.rel (0) target = $region29
    $region28: #{forward.1} parent=1 // pred_region
      _
    $region29: #{forward.1} parent=1 // pred_fallthru
      _
    // Predicated region
    $region30: #{forward.1} parent=1 // pred_check
      _
    $region31: #{forward.1} parent=1 // pred_check_branch
      %330 = sbr.rel (0) target = $region33
    $region32: #{forward.1} parent=1 // pred_region
      _
    $region33: #{forward.1} parent=1 // pred_fallthru
      _
    %331 = vsyncpa [#allocation3], 1

</llo_original>
